<compile_context>
chip_gen: v5e
topology: v5e:2x2
jax: 0.10.0
libtpu: 0.0.40
codegen_flags: <defaults>
</compile_context>

<pallas_src>
import functools

import jax
import jax.numpy as jnp
from jax import lax
from jax.experimental import pallas as pl
from jax.experimental.pallas import tpu as pltpu

IMAGE_RGB_MEAN = [0.485, 0.456, 0.406]
IMAGE_RGB_STD = [0.229, 0.224, 0.225]


def _rgb_kernel(x_ref, o_ref, *, scale_consts, bias_consts, num_channels, br):
    # Row r of the flattened (N*C, H*W) view belongs to channel r % C.
    # Synthesize the per-row scale/bias columns from compile-time constants.
    row_in_block = lax.broadcasted_iota(jnp.int32, (br, 1), 0)
    row = pl.program_id(1) * br + row_in_block            # global row index
    ch = row % num_channels
    scale = jnp.full((br, 1), scale_consts[-1], dtype=jnp.float32)
    bias = jnp.full((br, 1), bias_consts[-1], dtype=jnp.float32)
    for c in range(num_channels - 1):
        scale = jnp.where(ch == c, jnp.float32(scale_consts[c]), scale)
        bias = jnp.where(ch == c, jnp.float32(bias_consts[c]), bias)
    # Compute in f32 (free for f32 inputs, correct for bf16), cast on store:
    #   y = x * (1/std) - mean/std == (x - mean) / std
    xf = x_ref[...].astype(jnp.float32)
    o_ref[...] = (xf * scale - bias).astype(o_ref.dtype)


def rgb_normalize(x, mean, std, *, target_block_bytes=4 * 1024 * 1024,
                  donate_input=False):
    """x: (N, C, H, W); mean/std: per-channel constants of length C."""
    N, C, H, W = x.shape
    R = N * C          # one row per (n, c) plane
    S = H * W          # flattened spatial extent (lane axis)
    elem_bytes = jnp.dtype(x.dtype).itemsize

    # Compile-time scalar constants (module buffers are fixed).
    mean_f = [float(v) for v in mean]
    std_f = [float(v) for v in std]
    scale_consts = tuple(1.0 / s for s in std_f)
    bias_consts = tuple(m / s for m, s in zip(mean_f, std_f))

    # Zero-cost reshape for contiguous NCHW input.
    x2 = x.reshape(R, S)

    # Row tile: full extent whenever R is modest (no masked tail row block,
    # grid effectively 1-D); otherwise a dtype-aware sublane multiple.
    if R <= 512:
        br = R
    else:
        sub = {4: 8, 2: 16, 1: 32}.get(elem_bytes, 8)
        br = 32 * sub

    # Column tile: lane-dense (multiple of 128), byte-budgeted (~4 MiB/block).
    cols_budget = max(128, (target_block_bytes // (br * elem_bytes)) // 128 * 128)
    if S <= cols_budget:
        bc = S                                    # full extent -> always legal
    else:
        bc = cols_budget
        # Prefer a 128-multiple near the budget that divides S (no masked
        # partial last column block). Trace-time-only search.
        for cand in range(cols_budget, 127, -128):
            if S % cand == 0:
                bc = cand
                break

    # Column (large) axis leads the grid -> it is what megacore shards on v7x.
    grid = (pl.cdiv(S, bc), pl.cdiv(R, br))

    kernel = functools.partial(
        _rgb_kernel,
        scale_consts=scale_consts,
        bias_consts=bias_consts,
        num_channels=C,
        br=br,
    )

    out2 = pl.pallas_call(
        kernel,
        out_shape=jax.ShapeDtypeStruct((R, S), x.dtype),
        grid=grid,
        in_specs=[pl.BlockSpec((br, bc), lambda j, i: (i, j))],
        out_specs=pl.BlockSpec((br, bc), lambda j, i: (i, j)),
        input_output_aliases={0: 0} if donate_input else {},
        compiler_params=pltpu.CompilerParams(
            dimension_semantics=("parallel", "parallel"),
            vmem_limit_bytes=48 * 1024 * 1024,
        ),
    )(x2)

    return out2.reshape(N, C, H, W)


if __name__ == "__main__":
    key = jax.random.PRNGKey(0)
    # Small NCHW input consistent with the module (RGB image batch, C=3).
    N, C, H, W = 2, 3, 16, 16
    x = jax.random.uniform(key, (N, C, H, W), dtype=jnp.float32)

    out = rgb_normalize(x, IMAGE_RGB_MEAN, IMAGE_RGB_STD)
    out = jax.block_until_ready(out)

    # Pure-JAX reference (matches PyTorch broadcasting of (1,3,1,1) buffers).
    mean = jnp.asarray(IMAGE_RGB_MEAN, dtype=jnp.float32).reshape(1, C, 1, 1)
    std = jnp.asarray(IMAGE_RGB_STD, dtype=jnp.float32).reshape(1, C, 1, 1)
    ref = (x - mean) / std

    assert out.shape == x.shape and out.dtype == x.dtype
    # multiply-by-reciprocal vs true divide differs by ~1-2 ulps in f32 ->
    # well inside 1e-5.
    assert jnp.allclose(out, ref, atol=1e-5, rtol=1e-5)

    print("KERNEL_OK")
</pallas_src>

<mosaic_0001>
module attributes {stable_mosaic.version = 11 : i64} {
  func.func @_rgb_kernel(%arg0: i32, %arg1: i32, %arg2: memref<6x256xf32, #tpu.memory_space<vmem>>, %arg3: memref<6x256xf32, #tpu.memory_space<vmem>>) attributes {dimension_semantics = [#tpu.dimension_semantics<parallel>, #tpu.dimension_semantics<parallel>], iteration_bounds = array<i64: 1, 1>, scalar_prefetch = 0 : i64, scratch_operands = 0 : i64, tpu.core_type = #tpu.core_type<tc>, window_params = [{transform_indices = @transform_0, window_bounds = array<i64: 6, 256>}, {transform_indices = @transform_1, window_bounds = array<i64: 6, 256>}]} {
    %0 = tpu.iota {dimensions = array<i32: 0>} : vector<6x1xi32>
    %c6_i32 = arith.constant 6 : i32
    %1 = arith.muli %arg1, %c6_i32 : i32
    %2 = vector.broadcast %1 : i32 to vector<6x1xi32>
    %3 = arith.addi %2, %0 : vector<6x1xi32>
    %c3_i32 = arith.constant 3 : i32
    %c0_i32 = arith.constant 0 : i32
    %4 = arith.cmpi eq, %c3_i32, %c0_i32 : i32
    %c1_i32 = arith.constant 1 : i32
    %5 = arith.select %4, %c1_i32, %c3_i32 : i32
    %6 = vector.broadcast %5 : i32 to vector<6x1xi32>
    %7 = arith.remsi %3, %6 : vector<6x1xi32>
    %c0_i32_0 = arith.constant 0 : i32
    %8 = vector.broadcast %c0_i32_0 : i32 to vector<6x1xi32>
    %9 = arith.cmpi ne, %7, %8 : vector<6x1xi32>
    %c0_i32_1 = arith.constant 0 : i32
    %10 = vector.broadcast %c0_i32_1 : i32 to vector<6x1xi32>
    %11 = arith.cmpi slt, %7, %10 : vector<6x1xi32>
    %c0_i32_2 = arith.constant 0 : i32
    %12 = arith.cmpi slt, %5, %c0_i32_2 : i32
    %13 = vector.broadcast %12 : i1 to vector<6x1xi1>
    %14 = vector.broadcast %13 : vector<6x1xi1> to vector<6x1xi1>
    %15 = arith.xori %11, %14 : vector<6x1xi1>
    %16 = arith.andi %15, %9 : vector<6x1xi1>
    %17 = vector.broadcast %5 : i32 to vector<6x1xi32>
    %18 = arith.addi %7, %17 : vector<6x1xi32>
    %19 = arith.select %16, %18, %7 : vector<6x1xi1>, vector<6x1xi32>
    %cst = arith.constant 4.44444466 : f32
    %20 = vector.broadcast %cst : f32 to vector<6x1xf32>
    %cst_3 = arith.constant 1.80444443 : f32
    %21 = vector.broadcast %cst_3 : f32 to vector<6x1xf32>
    %c0_i32_4 = arith.constant 0 : i32
    %22 = vector.broadcast %c0_i32_4 : i32 to vector<6x1xi32>
    %23 = arith.cmpi eq, %19, %22 : vector<6x1xi32>
    %cst_5 = arith.constant 4.36681223 : f32
    %24 = vector.broadcast %cst_5 : f32 to vector<6x1xf32>
    %25 = arith.select %23, %24, %20 : vector<6x1xi1>, vector<6x1xf32>
    %c0_i32_6 = arith.constant 0 : i32
    %26 = vector.broadcast %c0_i32_6 : i32 to vector<6x1xi32>
    %27 = arith.cmpi eq, %19, %26 : vector<6x1xi32>
    %cst_7 = arith.constant 2.11790395 : f32
    %28 = vector.broadcast %cst_7 : f32 to vector<6x1xf32>
    %29 = arith.select %27, %28, %21 : vector<6x1xi1>, vector<6x1xf32>
    %c1_i32_8 = arith.constant 1 : i32
    %30 = vector.broadcast %c1_i32_8 : i32 to vector<6x1xi32>
    %31 = arith.cmpi eq, %19, %30 : vector<6x1xi32>
    %cst_9 = arith.constant 4.46428585 : f32
    %32 = vector.broadcast %cst_9 : f32 to vector<6x1xf32>
    %33 = arith.select %31, %32, %25 : vector<6x1xi1>, vector<6x1xf32>
    %c1_i32_10 = arith.constant 1 : i32
    %34 = vector.broadcast %c1_i32_10 : i32 to vector<6x1xi32>
    %35 = arith.cmpi eq, %19, %34 : vector<6x1xi32>
    %cst_11 = arith.constant 2.03571439 : f32
    %36 = vector.broadcast %cst_11 : f32 to vector<6x1xf32>
    %37 = arith.select %35, %36, %29 : vector<6x1xi1>, vector<6x1xf32>
    %c0 = arith.constant 0 : index
    %c0_12 = arith.constant 0 : index
    %38 = vector.load %arg2[%c0, %c0_12] : memref<6x256xf32, #tpu.memory_space<vmem>>, vector<6x256xf32>
    %39 = vector.broadcast %33 : vector<6x1xf32> to vector<6x256xf32>
    %40 = arith.mulf %38, %39 : vector<6x256xf32>
    %41 = vector.broadcast %37 : vector<6x1xf32> to vector<6x256xf32>
    %42 = arith.subf %40, %41 : vector<6x256xf32>
    %c0_13 = arith.constant 0 : index
    %c0_14 = arith.constant 0 : index
    %43 = vector.load %arg3[%c0_13, %c0_14] : memref<6x256xf32, #tpu.memory_space<vmem>>, vector<6x256xf32>
    tpu.vector_store %arg3[%c0_13, %c0_14], %42 {strides = array<i32>} : memref<6x256xf32, #tpu.memory_space<vmem>>, vector<6x256xf32>,
    return
  }
  func.func @transform_0(%arg0: i32, %arg1: i32) -> (i32, i32) {
    %c0_i32 = arith.constant 0 : i32
    return %arg1, %arg0 : i32, i32
  }
  func.func @transform_1(%arg0: i32, %arg1: i32) -> (i32, i32) {
    %c0_i32 = arith.constant 0 : i32
    return %arg1, %arg0 : i32, i32
  }
}

</mosaic_0001>

<llo_original>
// kernel: tpu_custom_call.1
$region0: #{tpu_custom_call.1}
  #allocation0 [shape = 'u32[]', space=smem, size = 0x4, offset = 0x4, fixed_abs, tag = 'smem constant byte address 0x4 - core index']
  #allocation1 [shape = 'u32[72,128]{1,0:T(1,128)}', space=vmem, size = 0x9000, scoped, tag = 'internal scratch']
  %s0 = inlined_call_operand.hbm [shape: f32[6,256], index: 0, kind: input, shape index: {}]
  %s1 = inlined_call_operand.hbm [shape: f32[6,256], index: 1, kind: output, shape index: {}]
  %s2 = sld [smem:[#allocation0]]
  $region18: #{tpu_custom_call.1} parent=0
    _
  %s4 = ssub.s32 1, %s2
  %s5 = scalar_select 0, %s4, %s2
  $region1: #{tpu_custom_call.1} parent=0
    #allocation2 [shape = 'u8[8192]{0}', space=vmem, size = 0x2000, scoped, tag = 'input window, operand 0, single buffered']
    #allocation3 [shape = 's32[1]{0}', space=sflag, size = 0x4, scoped, tag = 'scoped memory for tpu_custom_call.1']
    #allocation4 [shape = 's32[1]{0}', space=sflag, size = 0x4, scoped, tag = 'scoped memory for tpu_custom_call.1']
    #allocation5 [shape = 'u8[8192]{0}', space=vmem, size = 0x2000, scoped, tag = 'output window, operand 0, single buffered']
    %6 = vsyncpa [#allocation3], 0
    %7 = vsyncpa [#allocation4], 0
    // Predicated region
    $region2: #{tpu_custom_call.1} parent=1 // pred_check
      _
    $region3: #{tpu_custom_call.1} parent=1 // pred_check_branch
      %9 = sbr.rel (0) target = $region5
    $region4: #{tpu_custom_call.1} parent=1 // pred_region
      %11 = vsyncadd [#allocation3], 0
      %s13 = sshll.u32 %s0, 4
      %s14 = int_to_ptr.hbm [resolvable:$true] %s13
      %s15 = sshll.u32 [#allocation2], 4
      %s16 = int_to_ptr.vmem [resolvable:$true] %s15
      %18 = dma.hbm_to_vmem [thread:$0]  %s14, 256, %s16, [#allocation3]
    $region5: #{tpu_custom_call.1} parent=1 // pred_fallthru
      _
    // Predicated region
    $region6: #{tpu_custom_call.1} parent=1 // pred_check
      _
    $region7: #{tpu_custom_call.1} parent=1 // pred_check_branch
      %20 = sbr.rel (0) target = $region9
    $region8: #{tpu_custom_call.1} parent=1 // pred_region
      %22 = dma.done [#allocation3], 256
    $region9: #{tpu_custom_call.1} parent=1 // pred_fallthru
      _
    %v23 = vlaneseq
    %v24 = vshrl.u32 %v23, 7
    %s25 = smul.u32 0, 6
    %v26 = vstv %s25
    %v27 = vadd.s32 %v26, %v24
    %vm28 = vcmp.lt.s32.totalorder %v27, 0
    %v29 = vsub.s32 0, %v27
    %v30 = vsel %vm28, %v29, %v27
    %v31 = vand.u32 %v30, 65535
    %v32 = vshrl.u32 %v30, 16
    %v34 = vmul.u32 %v31, 43691
    %v35 = vmul.u32 %v31, 43690
    %v36 = vmul.u32 %v32, 43691
    %v37 = vmul.u32 %v32, 43690
    %v38 = vshll.u32 %v35, 16
    %v39 = vshrl.u32 %v35, 16
    %v40 = vshll.u32 %v36, 16
    %v41 = vshrl.u32 %v36, 16
    %vm42 = vc.u32 %v34, %v38
    %v43 = vsel %vm42, 1, 0
    %v44 = vadd.s32 %v34, %v38
    %v45 = vadd.s32 %v37, %v43
    %vm46 = vc.u32 %v44, %v40
    %v47 = vsel %vm46, 1, 0
    %v48 = vadd.s32 %v44, %v40
    %v49 = vadd.s32 %v45, %v47
    %v50 = vadd.s32 %v49, %v39
    %v51 = vadd.s32 %v50, %v41
    %v52 = vshrl.u32 %v51, 1
    %v53 = vmul.u32 %v52, 3
    %v54 = vsub.s32 %v30, %v53
    %v55 = vsub.s32 0, %v54
    %v56 = vsel %vm28, %v55, %v54
    %vm57 = vcmp.ne.s32.totalorder %v56, 0
    %vm58 = vcmp.lt.s32.totalorder %v56, 0
    %vm59 = vmand %vm58, %vm57
    %v60 = vadd.s32 %v56, 3
    %v61 = vsel %vm59, %v60, %v56
    %vm62 = vcmp.eq.s32.totalorder %v61, 0
    %v63 = vsel %vm62, 4.366812, 4.4444447
    %v64 = vsel %vm62, 2.117904, 1.8044444
    %vm65 = vcmp.eq.s32.totalorder %v61, 1
    %v66 = vsel %vm65, 4.464286, %v63
    %v67 = vsel %vm65, 2.0357144, %v64
    %v68 = vld [vmem:[#allocation2] sm:$0x3f]
    %v69 = vld [vmem:[#allocation2 + $0x8] sm:$0x3f]
    %v70 = vmul.f32 %v68, %v66
    %v71 = vmul.f32 %v69, %v66
    %v72 = vsub.f32 %v70, %v67
    %v73 = vsub.f32 %v71, %v67
    %74 = vst [vmem:[#allocation5] sm:$0x3f] %v72
    %75 = vst [vmem:[#allocation5 + $0x8] sm:$0x3f] %v73
    // Predicated region
    $region10: #{tpu_custom_call.1} parent=1 // pred_check
      _
    $region11: #{tpu_custom_call.1} parent=1 // pred_check_branch
      %77 = sbr.rel (0) target = $region13
    $region12: #{tpu_custom_call.1} parent=1 // pred_region
      %79 = vsyncadd [#allocation4], 0
      %s81 = sshll.u32 [#allocation5], 4
      %s82 = int_to_ptr.vmem [resolvable:$true] %s81
      %s83 = sshll.u32 %s1, 4
      %s84 = int_to_ptr.hbm [resolvable:$true] %s83
      %86 = dma.vmem_to_hbm [thread:$0]  %s82, 256, %s84, [#allocation4]
    $region13: #{tpu_custom_call.1} parent=1 // pred_fallthru
      _
    // Predicated region
    $region14: #{tpu_custom_call.1} parent=1 // pred_check
      _
    $region15: #{tpu_custom_call.1} parent=1 // pred_check_branch
      %88 = sbr.rel (0) target = $region17
    $region16: #{tpu_custom_call.1} parent=1 // pred_region
      %90 = dma.done [#allocation4], 256
    $region17: #{tpu_custom_call.1} parent=1 // pred_fallthru
      _
    %91 = vsyncpa [#allocation3], 1
    %92 = vsyncpa [#allocation4], 1

</llo_original>
